<compile_context>
chip_gen: v7x
topology: tpu7x:2x2x1
jax: 0.10.0
libtpu: 0.0.40
codegen_flags: <defaults>
</compile_context>

<pallas_src>
import jax
import jax.numpy as jnp
import numpy as np
from jax.experimental import pallas as pl
from jax.experimental.pallas import tpu as pltpu


# ---------------------------------------------------------------------------
# Entmax 1.5 (exact algorithm of entmax.Entmax15, dim=-1) — parameter-side glue.
# ---------------------------------------------------------------------------
def entmax15(z, axis=-1):
    z = z - jnp.max(z, axis=axis, keepdims=True)
    z = z / 2.0
    d = z.shape[axis]
    zsrt = -jnp.sort(-z, axis=axis)                      # descending sort
    rho = jnp.arange(1, d + 1, dtype=z.dtype)
    mean = jnp.cumsum(zsrt, axis=axis) / rho
    mean_sq = jnp.cumsum(zsrt * zsrt, axis=axis) / rho
    ss = rho * (mean_sq - mean * mean)
    delta = (1.0 - ss) / rho
    tau = mean - jnp.sqrt(jnp.clip(delta, 0.0, None))
    support = jnp.sum((tau <= zsrt).astype(jnp.int32), axis=axis, keepdims=True)
    tau_star = jnp.take_along_axis(tau, support - 1, axis=axis)
    return jnp.clip(z - tau_star, 0.0, None) ** 2


# ---------------------------------------------------------------------------
# Pallas kernel: out[b, n, d] = mask[n, d] * x[b, d], batch-blocked.
# ---------------------------------------------------------------------------
def _locality_kernel(mask_ref, x_ref, o_ref):
    mask = mask_ref[...]                          # (n_path, D) float32, VMEM-resident
    x = x_ref[...].astype(jnp.float32)            # (TB, D)
    # Pure VPU broadcast-multiply; stores are lane-dense along D.
    o_ref[...] = (x[:, None, :] * mask[None, :, :]).astype(o_ref.dtype)


def _round_up(v, m):
    return (v + m - 1) // m * m


# Keep the double-buffered working set well inside the smallest VMEM across
# generations (v7x has only 64 MiB physical per TensorCore).
_VMEM_BUDGET = 32 * 1024 * 1024


def _pick_block_b(B, n_path, D, x_bytes, out_bytes):
    """Batch-tile size: as large as the VMEM budget allows, multiple of 8."""
    mask_bytes = 2 * n_path * D * 4                          # (conservative) mask buffers
    per_row = 2 * D * x_bytes + 2 * n_path * D * out_bytes   # dbl-buffered x + out rows
    tb = (_VMEM_BUDGET - mask_bytes) // per_row
    tb = int(max(8, min(tb, 1024)))                          # diminishing returns past ~1K
    if B >= 16:
        # Keep at least 2 grid steps so both cores (megacore / v7x) get work.
        tb = min(tb, _round_up(-(-B // 2), 8))
    if B >= 8:
        tb = min(tb, (B // 8) * 8)                           # sublane-dense, <= B
        tb = max(8, (tb // 8) * 8)
    else:
        tb = B                                               # tiny batch: single block
    return tb


def learnable_locality_forward(weight, x, *, block_b=None):
    """weight: (n_path, D) raw parameter; x: (B, D). Returns (B, n_path, D)."""
    n_path, D = weight.shape
    B, Dx = x.shape
    assert D == Dx

    # Keep the entmax15 probabilities in float32 (do NOT quantize to x.dtype);
    # matches torch, where the f32 mask promotes the einsum result.
    mask = entmax15(weight.astype(jnp.float32), axis=-1)     # (n_path, D) f32
    out_dtype = jnp.promote_types(x.dtype, jnp.float32)

    x_bytes = jnp.dtype(x.dtype).itemsize
    out_bytes = jnp.dtype(out_dtype).itemsize
    tb = block_b if block_b is not None else _pick_block_b(B, n_path, D, x_bytes, out_bytes)
    grid = (pl.cdiv(B, tb),)

    vmem_needed = (2 * n_path * D * 4
                   + 2 * tb * D * x_bytes
                   + 2 * tb * n_path * D * out_bytes)
    vmem_limit = int(min(max(vmem_needed + 8 * 1024 * 1024, 32 * 1024 * 1024),
                         64 * 1024 * 1024))

    # NOTE: input_dim should ideally be a multiple of 128 so output stores stay
    # lane-dense; the kernel remains correct for any D (full-extent last block dim).
    # TODO(synk): fuse the downstream per-path FC / capsule contraction so the
    # broadcasted (B, n_path, D) tensor never hits HBM (the dominant traffic).
    return pl.pallas_call(
        _locality_kernel,
        out_shape=jax.ShapeDtypeStruct((B, n_path, D), out_dtype),
        grid_spec=pl.GridSpec(
            grid=grid,
            in_specs=[
                # grid-invariant mask: constant block index -> stays resident in VMEM
                pl.BlockSpec((n_path, D), lambda b: (0, 0)),
                # TB-row tile of x
                pl.BlockSpec((tb, D), lambda b: (b, 0)),
            ],
            out_specs=pl.BlockSpec((tb, n_path, D), lambda b: (b, 0, 0)),
        ),
        compiler_params=pltpu.CompilerParams(
            dimension_semantics=("parallel",),
            vmem_limit_bytes=vmem_limit,
        ),
    )(mask, x)


if __name__ == "__main__":
    key = jax.random.PRNGKey(0)
    k_w, k_x = jax.random.split(key)

    input_dim, n_path = 128, 8

    # torch.rand -> U[0, 1)
    weight = jax.random.uniform(k_w, (n_path, input_dim), dtype=jnp.float32)

    # reference mask (pure JAX); entmax15 rows must sum to 1
    mask_ref = entmax15(weight, axis=-1)
    np.testing.assert_allclose(np.asarray(mask_ref.sum(-1)), np.ones(n_path),
                               rtol=1e-5, atol=1e-5)

    fwd = jax.jit(learnable_locality_forward)

    # Exercise the multi-step batch-blocked grid (B=16 -> TB=8, 2 steps), the
    # tiny-batch single-block path (B=5), and bf16 input promotion.
    cases = [(16, jnp.float32), (5, jnp.float32), (16, jnp.bfloat16)]
    for B, dt in cases:
        x = jax.random.normal(jax.random.fold_in(k_x, B), (B, input_dim),
                              dtype=jnp.float32).astype(dt)
        out = jax.block_until_ready(fwd(weight, x))
        ref = jnp.einsum("nd,bd->bnd", mask_ref, x.astype(jnp.float32))
        np.testing.assert_allclose(np.asarray(out), np.asarray(ref),
                                   rtol=1e-5, atol=1e-6)
        assert out.shape == (B, n_path, input_dim)
        assert out.dtype == jnp.float32

    print("KERNEL_OK")
</pallas_src>

<mosaic_0001>
module attributes {stable_mosaic.version = 11 : i64} {
  func.func @_locality_kernel(%arg0: i32, %arg1: memref<8x128xf32, #tpu.memory_space<vmem>>, %arg2: memref<8x128xf32, #tpu.memory_space<vmem>>, %arg3: memref<8x8x128xf32, #tpu.memory_space<vmem>>) attributes {dimension_semantics = [#tpu.dimension_semantics<parallel>], iteration_bounds = array<i64: 2>, scalar_prefetch = 0 : i64, scratch_operands = 0 : i64, tpu.core_type = #tpu.core_type<tc>, window_params = [{pipeline_mode = #tpu.pipeline_mode<synchronous>, transform_indices = @transform_0, window_bounds = array<i64: 8, 128>}, {transform_indices = @transform_1, window_bounds = array<i64: 8, 128>}, {transform_indices = @transform_2, window_bounds = array<i64: 8, 8, 128>}]} {
    %c0 = arith.constant 0 : index
    %c0_0 = arith.constant 0 : index
    %0 = vector.load %arg1[%c0, %c0_0] : memref<8x128xf32, #tpu.memory_space<vmem>>, vector<8x128xf32>
    %c0_1 = arith.constant 0 : index
    %c0_2 = arith.constant 0 : index
    %1 = vector.load %arg2[%c0_1, %c0_2] : memref<8x128xf32, #tpu.memory_space<vmem>>, vector<8x128xf32>
    %2 = vector.shape_cast %1 : vector<8x128xf32> to vector<8x1x128xf32>
    %3 = vector.shape_cast %0 : vector<8x128xf32> to vector<1x8x128xf32>
    %4 = vector.broadcast %2 : vector<8x1x128xf32> to vector<8x8x128xf32>
    %5 = vector.broadcast %3 : vector<1x8x128xf32> to vector<8x8x128xf32>
    %6 = arith.mulf %4, %5 : vector<8x8x128xf32>
    %c0_3 = arith.constant 0 : index
    %c0_4 = arith.constant 0 : index
    %c0_5 = arith.constant 0 : index
    %7 = vector.load %arg3[%c0_3, %c0_4, %c0_5] : memref<8x8x128xf32, #tpu.memory_space<vmem>>, vector<8x8x128xf32>
    tpu.vector_store %arg3[%c0_3, %c0_4, %c0_5], %6 {strides = array<i32>} : memref<8x8x128xf32, #tpu.memory_space<vmem>>, vector<8x8x128xf32>,
    return
  }
  func.func @transform_0(%arg0: i32) -> (i32, i32) {
    %c0_i32 = arith.constant 0 : i32
    %c0_i32_0 = arith.constant 0 : i32
    %c0_i32_1 = arith.constant 0 : i32
    return %c0_i32, %c0_i32_0 : i32, i32
  }
  func.func @transform_1(%arg0: i32) -> (i32, i32) {
    %c0_i32 = arith.constant 0 : i32
    %c0_i32_0 = arith.constant 0 : i32
    return %arg0, %c0_i32 : i32, i32
  }
  func.func @transform_2(%arg0: i32) -> (i32, i32, i32) {
    %c0_i32 = arith.constant 0 : i32
    %c0_i32_0 = arith.constant 0 : i32
    %c0_i32_1 = arith.constant 0 : i32
    return %arg0, %c0_i32, %c0_i32_0 : i32, i32, i32
  }
}

</mosaic_0001>

<llo_original>
// kernel: learnable_locality_forward.1
$region0: #{learnable_locality_forward.1}
  #allocation0 [shape = 'u32[]', space=smem, size = 0x4, offset = 0x4, fixed_abs, tag = 'smem constant byte address 0x4 - core index']
  #allocation1 [shape = 'u32[144,128]{1,0:T(1,128)}', space=vmem, size = 0x12000, scoped, tag = 'internal scratch']
  %s0 = inlined_call_operand.vmem [shape: f32[8,128], index: 0, kind: input, shape index: {}]
  %s1 = inlined_call_operand.vmem [shape: f32[16,128], index: 1, kind: input, shape index: {}]
  %s2 = inlined_call_operand.hbm [shape: f32[16,8,128], index: 2, kind: output, shape index: {}]
  %s3 = sld [smem:[#allocation0]]
  $region41: #{learnable_locality_forward.1} parent=0
    _
  %s5 = ssub.s32 1, %s3
  %s6 = scalar_select 0, %s5, %s3
  $region1: #{learnable_locality_forward.1} parent=0
    #allocation2 [shape = 'u8[65536]{0}', space=vmem, size = 0x10000, scoped, tag = 'output window, operand 0']
    #allocation3 [shape = 's32[2]{0}', space=sflag, size = 0x8, scoped, tag = 'scoped memory for learnable_locality_forward.1']
    %7 = vsyncpa [#allocation3], 0
    %s8 = scalar_lea.sflag [#allocation3], 1
    %9 = vsyncpa %s8, 0
    loop: start=0, step=1, limit=4
    $region2: #{learnable_locality_forward.1} parent=1 // loop_pre_header
      _
    $region3: #{learnable_locality_forward.1} parent=1 // loop_header
      %s11 = sphi 0, %s15
      %p12 = scmp.ge.s32.totalorder %s11, 4
      %s19 = sphi 0, %s19
      %s21 = sphi 0, %s19
      %s22 = sphi 0, %s21
      %s36 = sphi 0, %s22
      %s42 = sphi 0, %s44
      %s45 = sphi 0, %s42
      %s46 = sphi 0, %s45
      %s62 = sphi 0, %s46
      %s68 = sphi 0, %s70
      %s71 = sphi 0, %s68
      %s72 = sphi 0, %s71
      %s88 = sphi 0, %s72
    $region4: #{learnable_locality_forward.1} parent=1 // loop_header_branch
      %14 = sbr.rel (%p12) target = $region8
    $region5: #{learnable_locality_forward.1} parent=1 // loop_body
      %s16 = ssub.s32 %s11, 1
      %s17 = ssub.s32 %s11, 2
      %s18 = sadd.s32 %s11, 1
      %s20 = sadd.s32 %s19, 1
      %p23 = scmp.eq.s32.totalorder %s11, 1
      %p24 = scmp.ne.s32.totalorder %s19, %s21
      %p25 = scmp.eq.s32.totalorder %s11, 0
      %p26 = por %p24, %p25
      %p27 = scmp.ne.s32.totalorder %s19, %s21
      %p28 = scmp.eq.s32.totalorder %s16, 1
      %p29 = por %p27, %p28
      %p30 = scmp.ne.s32.totalorder %s21, %s22
      %p31 = scmp.eq.s32.totalorder %s16, 0
      %p32 = por %p30, %p31
      %p33 = scmp.ne.s32.totalorder %s21, %s22
      %p34 = scmp.eq.s32.totalorder %s17, 1
      %p35 = por %p33, %p34
      %p37 = scmp.ne.s32.totalorder %s22, %s36
      %p38 = scmp.eq.s32.totalorder %s17, 0
      %p39 = por %p37, %p38
      %s40 = ssub.s32 %s11, %s18
      %p41 = scmp.eq.s32.totalorder %s40, 0
      %s43 = sadd.s32 %s42, 1
      %s44 = scalar_select %p41, %s42, %s43
      %p47 = pneg %p41
      %p48 = scmp.eq.s32.totalorder %s11, 1
      %p49 = por %p47, %p48
      %p50 = scmp.ne.s32.totalorder %s42, %s45
      %p51 = scmp.eq.s32.totalorder %s11, 0
      %p52 = por %p50, %p51
      %p53 = scmp.ne.s32.totalorder %s42, %s45
      %p54 = scmp.eq.s32.totalorder %s16, 1
      %p55 = por %p53, %p54
      %p56 = scmp.ne.s32.totalorder %s45, %s46
      %p57 = scmp.eq.s32.totalorder %s16, 0
      %p58 = por %p56, %p57
      %p59 = scmp.ne.s32.totalorder %s45, %s46
      %p60 = scmp.eq.s32.totalorder %s17, 1
      %p61 = por %p59, %p60
      %p63 = scmp.ne.s32.totalorder %s46, %s62
      %p64 = scmp.eq.s32.totalorder %s17, 0
      %p65 = por %p63, %p64
      %s66 = ssub.s32 %s11, %s18
      %p67 = scmp.eq.s32.totalorder %s66, 0
      %s69 = sadd.s32 %s68, 1
      %s70 = scalar_select %p67, %s68, %s69
      %p73 = pneg %p67
      %p74 = scmp.eq.s32.totalorder %s11, 1
      %p75 = por %p73, %p74
      %p76 = scmp.ne.s32.totalorder %s68, %s71
      %p77 = scmp.eq.s32.totalorder %s11, 0
      %p78 = por %p76, %p77
      %p79 = scmp.ne.s32.totalorder %s68, %s71
      %p80 = scmp.eq.s32.totalorder %s16, 1
      %p81 = por %p79, %p80
      %p82 = scmp.ne.s32.totalorder %s71, %s72
      %p83 = scmp.eq.s32.totalorder %s16, 0
      %p84 = por %p82, %p83
      %p85 = scmp.ne.s32.totalorder %s71, %s72
      %p86 = scmp.eq.s32.totalorder %s17, 1
      %p87 = por %p85, %p86
      %p89 = scmp.ne.s32.totalorder %s72, %s88
      %p90 = scmp.eq.s32.totalorder %s17, 0
      %p91 = por %p89, %p90
      %p92 = scmp.le.s32.totalorder 1, %s11
      %p93 = scmp.lt.s32.totalorder %s11, 3
      %p94 = pnand %p92, %p93
      %p95 = pneg %p94
      // Predicated region
      $region9: #{learnable_locality_forward.1} parent=5 // pred_check
        _
      $region10: #{learnable_locality_forward.1} parent=5 // pred_check_branch
        %97 = sbr.rel (%p94) target = $region12
      $region11: #{learnable_locality_forward.1} parent=5 // pred_region
        %s98 = ssub.s32 %s11, 1
        // Predicated region
        $region13: #{learnable_locality_forward.1} parent=11 // pred_check
          %p99 = pneg %p32
        $region14: #{learnable_locality_forward.1} parent=11 // pred_check_branch
          %101 = sbr.rel (%p99) target = $region16
        $region15: #{learnable_locality_forward.1} parent=11 // pred_region
          _
        $region16: #{learnable_locality_forward.1} parent=11 // pred_fallthru
          _
      $region12: #{learnable_locality_forward.1} parent=5 // pred_fallthru
        _
      %p102 = scmp.lt.s32.totalorder %s11, 2
      // Predicated region
      $region17: #{learnable_locality_forward.1} parent=5 // pred_check
        %p103 = pneg %p102
      $region18: #{learnable_locality_forward.1} parent=5 // pred_check_branch
        %105 = sbr.rel (%p103) target = $region20
      $region19: #{learnable_locality_forward.1} parent=5 // pred_region
        // Predicated region
        $region21: #{learnable_locality_forward.1} parent=19 // pred_check
          %p106 = pneg %p52
        $region22: #{learnable_locality_forward.1} parent=19 // pred_check_branch
          %108 = sbr.rel (%p106) target = $region24
        $region23: #{learnable_locality_forward.1} parent=19 // pred_region
          %p109 = scmp.lt.s32.totalorder %s11, 1
          %s110 = scalar_select %p109, %s11, 1
          %s111 = smul.addr %s110, 8
          %s112 = scalar_lea.vmem %s1, %s111
        $region24: #{learnable_locality_forward.1} parent=19 // pred_fallthru
          _
      $region20: #{learnable_locality_forward.1} parent=5 // pred_fallthru
        _
      %p113 = scmp.le.s32.totalorder 1, %s11
      %p114 = scmp.lt.s32.totalorder %s11, 3
      %p115 = pnand %p113, %p114
      %p116 = pneg %p115
      // Predicated region
      $region25: #{learnable_locality_forward.1} parent=5 // pred_check
        _
      $region26: #{learnable_locality_forward.1} parent=5 // pred_check_branch
        %118 = sbr.rel (%p115) target = $region28
      $region27: #{learnable_locality_forward.1} parent=5 // pred_region
        %s119 = ssub.s32 %s11, 1
        %p120 = pneg %p32
        %p121 = pneg %p29
        %p122 = scmp.lt.s32.totalorder %s16, 1
        %s123 = scalar_select %p122, %s16, 1
        %s124 = smul.addr %s123, 8
        %s125 = scalar_lea.vmem %s1, %s124
        %p126 = pneg %p58
        %p127 = pneg %p55
        %p128 = pneg %p84
        %p129 = pneg %p81
        %s130 = sand.u32 %s71, 1
        %s131 = scalar_lea.sflag [#allocation3], %s130
        %s132 = sand.u32 %s71, 1
        %s133 = smul.addr %s132, 64
        %s134 = scalar_lea.vmem [#allocation2], %s133
        %p135 = scmp.lt.s32.totalorder %s16, 1
        %s136 = scalar_select %p135, %s16, 1
        %s137 = smul.addr %s136, 8
        %s138 = scalar_lea.vmem %s1, %s137
        %s139 = smul.u32 8, %s16
        %v140 = vld [vmem:[%s0] sm:$0xff]
        %v141 = vld [vmem:[%s138] sm:$0xff]
        %v143 = vcombine.high %v141, %v141
        %v145 = vunpack.c.l.s4 1966171168
        %v146 = vunpack.c.0.s8 %v145
        %v147 = vlaneseq
        %v148 = vshrl.u32 %v147, 7
        %v149 = vsub.s32 %v146, %v148
        %v150 = vrot.slane %v141, %v149
        %v152 = vunpack.c.l.s4 1966171168
        %v153 = vunpack.c.0.s8 %v152
        %v154 = vlaneseq
        %v155 = vshrl.u32 %v154, 7
        %v156 = vsub.s32 %v153, %v155
        %v157 = vrot.slane %v143, %v156
        %v158 = vcombine.high %v150, %v150
        %v159 = vcombine.high %v157, %v157
        %v161 = vunpack.c.l.s4 1966171168
        %v162 = vunpack.c.0.s8 %v161
        %v163 = vlaneseq
        %v164 = vshrl.u32 %v163, 7
        %v165 = vsub.s32 %v162, %v164
        %v166 = vrot.slane %v150, %v165
        %v168 = vunpack.c.l.s4 1966171168
        %v169 = vunpack.c.0.s8 %v168
        %v170 = vlaneseq
        %v171 = vshrl.u32 %v170, 7
        %v172 = vsub.s32 %v169, %v171
        %v173 = vrot.slane %v157, %v172
        %v175 = vunpack.c.l.s4 1966171168
        %v176 = vunpack.c.0.s8 %v175
        %v177 = vlaneseq
        %v178 = vshrl.u32 %v177, 7
        %v179 = vsub.s32 %v176, %v178
        %v180 = vrot.slane %v158, %v179
        %v182 = vunpack.c.l.s4 1966171168
        %v183 = vunpack.c.0.s8 %v182
        %v184 = vlaneseq
        %v185 = vshrl.u32 %v184, 7
        %v186 = vsub.s32 %v183, %v185
        %v187 = vrot.slane %v159, %v186
        %v188 = vcombine.high %v166, %v166
        %v189 = vcombine.high %v173, %v173
        %v190 = vcombine.high %v180, %v180
        %v191 = vcombine.high %v187, %v187
        %v192 = vlaneseq
        %v193 = vshrl.u32 %v192, 7
        %v194 = vsub.s32 0, %v193
        %v195 = vrot.slane %v166, %v194
        %v196 = vlaneseq
        %v197 = vshrl.u32 %v196, 7
        %v198 = vsub.s32 0, %v197
        %v199 = vrot.slane %v180, %v198
        %v200 = vlaneseq
        %v201 = vshrl.u32 %v200, 7
        %v202 = vsub.s32 0, %v201
        %v203 = vrot.slane %v188, %v202
        %v204 = vlaneseq
        %v205 = vshrl.u32 %v204, 7
        %v206 = vsub.s32 0, %v205
        %v207 = vrot.slane %v190, %v206
        %v208 = vlaneseq
        %v209 = vshrl.u32 %v208, 7
        %v210 = vsub.s32 0, %v209
        %v211 = vrot.slane %v173, %v210
        %v212 = vlaneseq
        %v213 = vshrl.u32 %v212, 7
        %v214 = vsub.s32 0, %v213
        %v215 = vrot.slane %v187, %v214
        %v216 = vlaneseq
        %v217 = vshrl.u32 %v216, 7
        %v218 = vsub.s32 0, %v217
        %v219 = vrot.slane %v189, %v218
        %v220 = vlaneseq
        %v221 = vshrl.u32 %v220, 7
        %v222 = vsub.s32 0, %v221
        %v223 = vrot.slane %v191, %v222
        %v232 = vmul.f32 %v195, %v140
        %v233 = vmul.f32 %v199, %v140
        %v234 = vmul.f32 %v203, %v140
        %v235 = vmul.f32 %v207, %v140
        %v236 = vmul.f32 %v211, %v140
        %v237 = vmul.f32 %v215, %v140
        %v238 = vmul.f32 %v219, %v140
        %v239 = vmul.f32 %v223, %v140
        %240 = vst [vmem:[%s134] sm:$0xff] %v232
        %241 = vst [vmem:[%s134 + $0x8] sm:$0xff] %v233
        %242 = vst [vmem:[%s134 + $0x10] sm:$0xff] %v234
        %243 = vst [vmem:[%s134 + $0x18] sm:$0xff] %v235
        %244 = vst [vmem:[%s134 + $0x20] sm:$0xff] %v236
        %245 = vst [vmem:[%s134 + $0x28] sm:$0xff] %v237
        %246 = vst [vmem:[%s134 + $0x30] sm:$0xff] %v238
        %247 = vst [vmem:[%s134 + $0x38] sm:$0xff] %v239
        %s248 = sand.u32 %s71, 1
        %s249 = scalar_lea.sflag [#allocation3], %s248
        %s250 = sand.u32 %s71, 1
        %s251 = smul.addr %s250, 64
        %s252 = scalar_lea.vmem [#allocation2], %s251
        // Predicated region
        $region29: #{learnable_locality_forward.1} parent=27 // pred_check
          %p253 = pneg %p81
        $region30: #{learnable_locality_forward.1} parent=27 // pred_check_branch
          %255 = sbr.rel (%p253) target = $region32
        $region31: #{learnable_locality_forward.1} parent=27 // pred_region
          %s256 = smul.u32 8, %s16
          %s258 = ssub.s32 1024, 1024
          %259 = vsyncadd %s249, %s258
          %s260 = smul.addr %s256, 128
          %s261 = scalar_lea.hbm %s2, %s260
          %s262 = sshll.u32 %s252, 4
          %s263 = int_to_ptr.vmem [resolvable:$true] %s262
          %268 = dma.vmem_to_hbm [thread:$0]  %s263, 1024, %s261, %s249, 128, 128, 8
        $region32: #{learnable_locality_forward.1} parent=27 // pred_fallthru
          _
      $region28: #{learnable_locality_forward.1} parent=5 // pred_fallthru
        _
      %p269 = scmp.le.s32.totalorder 2, %s11
      // Predicated region
      $region33: #{learnable_locality_forward.1} parent=5 // pred_check
        %p270 = pneg %p269
      $region34: #{learnable_locality_forward.1} parent=5 // pred_check_branch
        %272 = sbr.rel (%p270) target = $region36
      $region35: #{learnable_locality_forward.1} parent=5 // pred_region
        %s273 = ssub.s32 %s11, 2
        // Predicated region
        $region37: #{learnable_locality_forward.1} parent=35 // pred_check
          %p274 = pneg %p87
        $region38: #{learnable_locality_forward.1} parent=35 // pred_check_branch
          %276 = sbr.rel (%p274) target = $region40
        $region39: #{learnable_locality_forward.1} parent=35 // pred_region
          %s277 = sand.u32 %s72, 1
          %s278 = scalar_lea.sflag [#allocation3], %s277
          %s279 = sand.u32 %s72, 1
          %s280 = smul.addr %s279, 64
          %s281 = scalar_lea.vmem [#allocation2], %s280
          %282 = dma.done %s278, 1024
        $region40: #{learnable_locality_forward.1} parent=35 // pred_fallthru
          _
      $region36: #{learnable_locality_forward.1} parent=5 // pred_fallthru
        _
    $region6: #{learnable_locality_forward.1} parent=1 // loop_footer
      %s15 = sadd.s32 1, %s11
    $region7: #{learnable_locality_forward.1} parent=1 // loop_footer_branch
      %10 = sbr.rel target = $region3
    $region8: #{learnable_locality_forward.1} parent=1 // loop_exit
      _
    %283 = vsyncpa [#allocation3], 1
    %s284 = scalar_lea.sflag [#allocation3], 1
    %285 = vsyncpa %s284, 1

</llo_original>
